<compile_context>
chip_gen: v7x
topology: tpu7x:2x2x1
jax: 0.10.0
libtpu: 0.0.40
codegen_flags: <defaults>
</compile_context>

<pallas_src>
import functools
import math

import jax
import jax.numpy as jnp
from jax.experimental import pallas as pl
from jax.experimental.pallas import tpu as pltpu


def _choose_tile(size, candidates):
    """Largest preferred tile that evenly divides `size`, else the full size."""
    for c in candidates:
        if size % c == 0:
            return c
    return size


# ----------------------------------------------------------------------------
# Linear projection kernel (M/N tiled, K accumulation in f32 scratch)
# ----------------------------------------------------------------------------
def _linear_kernel(x_ref, w_ref, o_ref, acc_ref):
    @pl.when(pl.program_id(2) == 0)
    def _():
        acc_ref[...] = jnp.zeros(acc_ref.shape, jnp.float32)

    # bf16 operands, f32 accumulation on the MXU.
    acc_ref[...] += jnp.dot(x_ref[...], w_ref[...],
                            preferred_element_type=jnp.float32)

    @pl.when(pl.program_id(2) == pl.num_programs(2) - 1)
    def _():
        o_ref[...] = acc_ref[...].astype(o_ref.dtype)


def pallas_linear(x2d, w, out_dtype=None):
    """x2d: (M, K), w: (K, N) -> (M, N)."""
    M, K = x2d.shape
    K2, N = w.shape
    assert K == K2
    out_dtype = x2d.dtype if out_dtype is None else out_dtype
    # Large tm => the (K, N) weight block is re-streamed from HBM fewer times.
    tm = _choose_tile(M, (1024, 512, 256, 128))
    tn = _choose_tile(N, (512, 256, 128))
    tk = _choose_tile(K, (512, 256, 128))
    grid = (M // tm, N // tn, K // tk)
    return pl.pallas_call(
        _linear_kernel,
        out_shape=jax.ShapeDtypeStruct((M, N), out_dtype),
        grid_spec=pltpu.PrefetchScalarGridSpec(
            num_scalar_prefetch=0,
            grid=grid,
            in_specs=[
                pl.BlockSpec((tm, tk), lambda i, j, k: (i, k)),
                pl.BlockSpec((tk, tn), lambda i, j, k: (k, j)),
            ],
            out_specs=pl.BlockSpec((tm, tn), lambda i, j, k: (i, j)),
            scratch_shapes=[pltpu.VMEM((tm, tn), jnp.float32)],
        ),
        compiler_params=pltpu.CompilerParams(
            dimension_semantics=("parallel", "parallel", "arbitrary"),
            vmem_limit_bytes=32 * 1024 * 1024),
    )(x2d, w)


# ----------------------------------------------------------------------------
# Flash attention kernel (online softmax, lane-dense (h*d) feature layout)
# ----------------------------------------------------------------------------
def _flash_attn_kernel(q_ref, k_ref, v_ref, o_ref, m_ref, l_ref, acc_ref, *,
                       num_heads, dim_heads, causal, tq, tk, num_q_tiles):
    t = pl.program_id(0)                  # flattened (batch, q_tile) index
    ki = pl.program_id(1)
    qi = t % num_q_tiles

    @pl.when(ki == 0)
    def _():
        m_ref[...] = jnp.full(m_ref.shape, -jnp.inf, jnp.float32)
        l_ref[...] = jnp.zeros(l_ref.shape, jnp.float32)
        acc_ref[...] = jnp.zeros(acc_ref.shape, jnp.float32)

    q_start = qi * tq
    kv_start = ki * tk

    def compute():
        mask_value = -jnp.finfo(jnp.float32).max
        for hh in range(num_heads):        # static unroll; per-head ref slices
            lo = hh * dim_heads
            hi = lo + dim_heads
            q_h = q_ref[0, :, lo:hi]       # (tq, d) bf16 (scale pre-folded)
            k_h = k_ref[0, :, lo:hi]       # (tk, d) bf16
            v_h = v_ref[0, :, lo:hi]       # (tk, d) bf16
            # q @ k^T (contraction on the last dim of both); f32 MXU accumulation.
            s = jax.lax.dot_general(
                q_h, k_h, (((1,), (1,)), ((), ())),
                preferred_element_type=jnp.float32)       # (tq, tk) f32
            if causal:
                def _apply_mask(sv):
                    row = q_start + jax.lax.broadcasted_iota(jnp.int32, sv.shape, 0)
                    col = kv_start + jax.lax.broadcasted_iota(jnp.int32, sv.shape, 1)
                    return jnp.where(col > row, mask_value, sv)
                # Only blocks that cross the diagonal need the iota/where pass.
                s = jax.lax.cond(kv_start + (tk - 1) > q_start,
                                 _apply_mask, lambda sv: sv, s)
            m_prev = m_ref[:, hh:hh + 1]                       # (tq, 1)
            l_prev = l_ref[:, hh:hh + 1]                       # (tq, 1)
            m_new = jnp.maximum(m_prev, jnp.max(s, axis=-1, keepdims=True))
            alpha = jnp.exp(m_prev - m_new)                    # (tq, 1)
            p = jnp.exp(s - m_new)                             # (tq, tk) f32
            l_ref[:, hh:hh + 1] = alpha * l_prev + jnp.sum(p, axis=-1, keepdims=True)
            m_ref[:, hh:hh + 1] = m_new
            acc_ref[:, lo:hi] = alpha * acc_ref[:, lo:hi] + jnp.dot(
                p.astype(v_h.dtype), v_h, preferred_element_type=jnp.float32)

    if causal:
        # Skip compute for kv tiles entirely above the diagonal (their DMA is
        # also skipped via the clamped index_map in pallas_flash_attention).
        @pl.when(kv_start <= q_start + (tq - 1))
        def _():
            compute()
    else:
        compute()

    @pl.when(ki == pl.num_programs(1) - 1)
    def _():
        for hh in range(num_heads):
            lo = hh * dim_heads
            hi = lo + dim_heads
            inv_l = pl.reciprocal(l_ref[:, hh:hh + 1], approx=True)  # EUP slot
            acc_ref[:, lo:hi] = acc_ref[:, lo:hi] * inv_l
        # Single lane-dense (tq, dim) store — no per-head masked stores.
        o_ref[0] = acc_ref[...].astype(o_ref.dtype)


def pallas_flash_attention(qkv, *, num_heads, dim_heads, causal):
    """qkv: (b, n, 3*dim) with [q | k | v] along the last axis -> (b, n, dim)."""
    b, n, three_dim = qkv.shape
    dim = num_heads * dim_heads
    assert three_dim == 3 * dim
    assert dim % 128 == 0, "feature dim (h*d) must be lane-aligned"
    assert num_heads <= 128

    tq = _choose_tile(n, (512, 256, 128))
    tk = _choose_tile(n, (256, 128))
    nq = n // tq
    nk = n // tk
    grid = (b * nq, nk)   # single large leading parallel axis (megacore-friendly)

    def q_map(t, ki):
        return (t // nq, t % nq, 0)

    if causal:
        def kv_block(t, ki):
            # Clamp to the last diagonal block: skipped steps repeat the previous
            # block index, so the pipeline does not re-DMA K/V for them.
            qi = t % nq
            last_valid = ((qi + 1) * tq - 1) // tk
            return jnp.minimum(ki, last_valid)
    else:
        def kv_block(t, ki):
            return ki

    def k_map(t, ki):
        return (t // nq, kv_block(t, ki), 1)

    def v_map(t, ki):
        return (t // nq, kv_block(t, ki), 2)

    def o_map(t, ki):
        return (t // nq, t % nq, 0)

    kernel = functools.partial(
        _flash_attn_kernel, num_heads=num_heads, dim_heads=dim_heads,
        causal=causal, tq=tq, tk=tk, num_q_tiles=nq)

    # qkv is passed three times; each operand only DMAs the lane-block its
    # index_map selects (q / k / v slab), so no split or relayout is needed.
    return pl.pallas_call(
        kernel,
        out_shape=jax.ShapeDtypeStruct((b, n, dim), qkv.dtype),
        grid_spec=pltpu.PrefetchScalarGridSpec(
            num_scalar_prefetch=0,
            grid=grid,
            in_specs=[
                pl.BlockSpec((1, tq, dim), q_map),
                pl.BlockSpec((1, tk, dim), k_map),
                pl.BlockSpec((1, tk, dim), v_map),
            ],
            out_specs=pl.BlockSpec((1, tq, dim), o_map),
            scratch_shapes=[
                pltpu.VMEM((tq, 128), jnp.float32),   # running max  (lane = head)
                pltpu.VMEM((tq, 128), jnp.float32),   # running denom(lane = head)
                pltpu.VMEM((tq, dim), jnp.float32),   # running out  (lane-dense)
            ],
        ),
        compiler_params=pltpu.CompilerParams(
            dimension_semantics=("parallel", "arbitrary"),
            vmem_limit_bytes=32 * 1024 * 1024),
    )(qkv, qkv, qkv)


# ----------------------------------------------------------------------------
# Attention module (self-attention branch of the PyTorch forward)
# ----------------------------------------------------------------------------
class AttentionPallas:
    def __init__(self, dim, dim_heads=64, causal=False, zero_init_output=True,
                 *, key):
        assert dim % dim_heads == 0
        self.dim = dim
        self.dim_heads = dim_heads
        self.num_heads = dim // dim_heads
        self.causal = causal
        k1, k2 = jax.random.split(key)
        # torch nn.Linear(dim, dim*3, bias=False): y = x @ W.T; we keep W.T as
        # (3, dim, dim) in f32 for the reference path.
        self.w_qkv = (jax.random.normal(k1, (3, dim, dim), jnp.float32)
                      / math.sqrt(dim))
        if zero_init_output:
            self.w_out = jnp.zeros((dim, dim), jnp.float32)
        else:
            self.w_out = (jax.random.normal(k2, (dim, dim), jnp.float32)
                          / math.sqrt(dim))
        # Kernel-side weights: fused (dim, 3*dim) with 1/sqrt(dim_heads) folded
        # into the q columns, stored in bf16 (operands bf16, f32 accumulation).
        scale = 1.0 / math.sqrt(dim_heads)
        w_fused = jnp.concatenate(
            [self.w_qkv[0] * scale, self.w_qkv[1], self.w_qkv[2]], axis=-1)
        self.w_qkv_fused_bf16 = w_fused.astype(jnp.bfloat16)
        self.w_out_bf16 = self.w_out.astype(jnp.bfloat16)

    def __call__(self, x, causal=None):
        b, n, dim = x.shape
        assert dim == self.dim
        out_dtype = x.dtype
        causal = self.causal if causal is None else causal
        if n == 1 and causal:
            causal = False

        x_bf16 = x.astype(jnp.bfloat16).reshape(b * n, dim)

        # --- to_qkv: single fused Pallas matmul -> (b*n, 3*dim) bf16 ---
        qkv = pallas_linear(x_bf16, self.w_qkv_fused_bf16)
        qkv = qkv.reshape(b, n, 3 * dim)                        # free reshape

        # --- flash attention (no head transposes, lane-dense output) ---
        out = pallas_flash_attention(
            qkv, num_heads=self.num_heads, dim_heads=self.dim_heads,
            causal=causal)                                      # (b, n, dim) bf16

        # --- to_out (Pallas matmul, cast back to input dtype) ---
        out = pallas_linear(out.reshape(b * n, dim), self.w_out_bf16,
                            out_dtype=out_dtype)
        return out.reshape(b, n, dim)


# ----------------------------------------------------------------------------
# Pure-JAX f32 reference (mirrors the PyTorch math path)
# ----------------------------------------------------------------------------
def reference_attention(x, w_qkv3, w_out, num_heads, dim_heads, causal):
    b, n, dim = x.shape
    h, d = num_heads, dim_heads
    x2 = x.reshape(b * n, dim)
    q = (x2 @ w_qkv3[0]).reshape(b, n, h, d).transpose(0, 2, 1, 3)
    k = (x2 @ w_qkv3[1]).reshape(b, n, h, d).transpose(0, 2, 1, 3)
    v = (x2 @ w_qkv3[2]).reshape(b, n, h, d).transpose(0, 2, 1, 3)
    scale = 1.0 / math.sqrt(d)
    dots = jnp.einsum('bhid,bhjd->bhij', q, k) * scale
    if causal:
        row = jnp.arange(n)[:, None]
        col = jnp.arange(n)[None, :]
        dots = jnp.where(col > row, -jnp.finfo(jnp.float32).max, dots)
    attn = jax.nn.softmax(dots.astype(jnp.float32), axis=-1)
    out = jnp.einsum('bhij,bhjd->bhid', attn, v)
    out = out.transpose(0, 2, 1, 3).reshape(b, n, dim)
    return (out.reshape(b * n, dim) @ w_out).reshape(b, n, dim)


if __name__ == "__main__":
    key = jax.random.PRNGKey(0)
    k_param, k_x = jax.random.split(key)

    batch, dim, dim_heads = 2, 128, 64          # num_heads = 2
    # zero_init_output=False so the test output is non-trivial (the module
    # default of True simply zeros the final projection — otherwise identical).
    attn = AttentionPallas(dim, dim_heads=dim_heads, causal=False,
                           zero_init_output=False, key=k_param)

    # (seq, causal): exercises the tiny single-tile path, the multi-q / multi-kv
    # online-softmax path, and the causal skip/clamped-DMA path.
    for seq, causal in [(16, False), (1024, False), (1024, True)]:
        kx = jax.random.fold_in(k_x, seq + int(causal))
        x = jax.random.normal(kx, (batch, seq, dim), jnp.float32)

        out = attn(x, causal=causal)
        out = jax.block_until_ready(out)
        assert out.shape == (batch, seq, dim)

        ref = reference_attention(x, attn.w_qkv, attn.w_out,
                                  attn.num_heads, attn.dim_heads, causal=causal)
        max_err = float(jnp.max(jnp.abs(out - ref)))
        # Tolerance accounts for bf16 matmul operands (f32 accumulation), the
        # EUP approximate reciprocal, and accumulation-order differences;
        # real bugs are O(1) off.
        assert jnp.allclose(out, ref, atol=5e-2, rtol=5e-2), \
            f"mismatch vs reference (seq={seq}, causal={causal}, max abs err {max_err})"

    print("KERNEL_OK")
</pallas_src>

<mosaic_0001>
module attributes {stable_mosaic.version = 11 : i64} {
  func.func @_linear_kernel(%arg0: i32, %arg1: i32, %arg2: i32, %arg3: memref<32x128xbf16, #tpu.memory_space<vmem>>, %arg4: memref<128x128xbf16, #tpu.memory_space<vmem>>, %arg5: memref<32x128xbf16, #tpu.memory_space<vmem>>, %arg6: memref<32x128xf32, #tpu.memory_space<vmem>>) attributes {dimension_semantics = [#tpu.dimension_semantics<parallel>, #tpu.dimension_semantics<parallel>, #tpu.dimension_semantics<arbitrary>], iteration_bounds = array<i64: 1, 3, 1>, scalar_prefetch = 0 : i64, scratch_operands = 1 : i64, tpu.core_type = #tpu.core_type<tc>, window_params = [{transform_indices = @transform_0, window_bounds = array<i64: 32, 128>}, {transform_indices = @transform_1, window_bounds = array<i64: 128, 128>}, {transform_indices = @transform_2, window_bounds = array<i64: 32, 128>}]} {
    %c0_i32 = arith.constant 0 : i32
    %0 = arith.cmpi eq, %arg2, %c0_i32 : i32
    %1 = arith.extui %0 : i1 to i32
    %c0_i32_0 = arith.constant 0 : i32
    %2 = arith.cmpi ne, %1, %c0_i32_0 : i32
    scf.if %2 {
      %cst_10 = arith.constant 0.000000e+00 : f32
      %12 = vector.broadcast %cst_10 : f32 to vector<32x128xf32>
      %c0_11 = arith.constant 0 : index
      %c0_12 = arith.constant 0 : index
      %13 = vector.load %arg6[%c0_11, %c0_12] : memref<32x128xf32, #tpu.memory_space<vmem>>, vector<32x128xf32>
      tpu.vector_store %arg6[%c0_11, %c0_12], %12 {strides = array<i32>} : memref<32x128xf32, #tpu.memory_space<vmem>>, vector<32x128xf32>,
    } else {
    }
    %c0 = arith.constant 0 : index
    %c0_1 = arith.constant 0 : index
    %3 = vector.load %arg6[%c0, %c0_1] : memref<32x128xf32, #tpu.memory_space<vmem>>, vector<32x128xf32>
    %c0_2 = arith.constant 0 : index
    %c0_3 = arith.constant 0 : index
    %4 = vector.load %arg3[%c0_2, %c0_3] : memref<32x128xbf16, #tpu.memory_space<vmem>>, vector<32x128xbf16>
    %c0_4 = arith.constant 0 : index
    %c0_5 = arith.constant 0 : index
    %5 = vector.load %arg4[%c0_4, %c0_5] : memref<128x128xbf16, #tpu.memory_space<vmem>>, vector<128x128xbf16>
    %cst = arith.constant dense<0.000000e+00> : vector<32x128xf32>
    %6 = tpu.matmul %4, %5, %cst {dimension_numbers = #tpu.dot_dimension_numbers<[1], [0], [0], [1], [0, 0, 1, 1], [], []>} : vector<32x128xbf16>, vector<128x128xbf16>, vector<32x128xf32> -> vector<32x128xf32>
    %7 = arith.addf %3, %6 : vector<32x128xf32>
    %c0_6 = arith.constant 0 : index
    %c0_7 = arith.constant 0 : index
    %8 = vector.load %arg6[%c0_6, %c0_7] : memref<32x128xf32, #tpu.memory_space<vmem>>, vector<32x128xf32>
    tpu.vector_store %arg6[%c0_6, %c0_7], %7 {strides = array<i32>} : memref<32x128xf32, #tpu.memory_space<vmem>>, vector<32x128xf32>,
    %c0_i32_8 = arith.constant 0 : i32
    %9 = arith.cmpi eq, %arg2, %c0_i32_8 : i32
    %10 = arith.extui %9 : i1 to i32
    %c0_i32_9 = arith.constant 0 : i32
    %11 = arith.cmpi ne, %10, %c0_i32_9 : i32
    scf.if %11 {
      %c0_10 = arith.constant 0 : index
      %c0_11 = arith.constant 0 : index
      %12 = vector.load %arg6[%c0_10, %c0_11] : memref<32x128xf32, #tpu.memory_space<vmem>>, vector<32x128xf32>
      %13 = arith.truncf %12 : vector<32x128xf32> to vector<32x128xbf16>
      %c0_12 = arith.constant 0 : index
      %c0_13 = arith.constant 0 : index
      %14 = vector.load %arg5[%c0_12, %c0_13] : memref<32x128xbf16, #tpu.memory_space<vmem>>, vector<32x128xbf16>
      tpu.vector_store %arg5[%c0_12, %c0_13], %13 {strides = array<i32>} : memref<32x128xbf16, #tpu.memory_space<vmem>>, vector<32x128xbf16>,
    } else {
    }
    return
  }
  func.func @transform_0(%arg0: i32, %arg1: i32, %arg2: i32) -> (i32, i32) {
    %c0_i32 = arith.constant 0 : i32
    return %arg0, %arg2 : i32, i32
  }
  func.func @transform_1(%arg0: i32, %arg1: i32, %arg2: i32) -> (i32, i32) {
    %c0_i32 = arith.constant 0 : i32
    return %arg2, %arg1 : i32, i32
  }
  func.func @transform_2(%arg0: i32, %arg1: i32, %arg2: i32) -> (i32, i32) {
    %c0_i32 = arith.constant 0 : i32
    return %arg0, %arg1 : i32, i32
  }
}

</mosaic_0001>

<llo_original>
// kernel: tpu_custom_call.1
$region0: #{tpu_custom_call.1}
  #allocation0 [shape = 'u32[]', space=smem, size = 0x4, offset = 0x4, fixed_abs, tag = 'smem constant byte address 0x4 - core index']
  #allocation1 [shape = 'u32[144,128]{1,0:T(1,128)}', space=vmem, size = 0x12000, scoped, tag = 'internal scratch']
  #allocation2 [shape = 'f32[32,128]{1,0:T(8,128)}', space=vmem, size = 0x4000, scoped, tag = 'scratch operand']
  %s0 = inlined_call_operand.hbm [shape: bf16[32,128], index: 0, kind: input, shape index: {}]
  %s1 = inlined_call_operand.hbm [shape: bf16[128,384], index: 1, kind: input, shape index: {}]
  %s2 = inlined_call_operand.hbm [shape: bf16[32,384], index: 2, kind: output, shape index: {}]
  %s3 = sld [smem:[#allocation0]]
  $region57: #{tpu_custom_call.1} parent=0
    _
  %s5 = ssub.s32 1, %s3
  %s6 = scalar_select 0, %s5, %s3
  $region1: #{tpu_custom_call.1} parent=0
    #allocation3 [shape = 'u8[8192]{0}', space=vmem, size = 0x2000, scoped, tag = 'input window, operand 0, single buffered']
    #allocation4 [shape = 's32[2]{0}', space=sflag, size = 0x8, scoped, tag = 'scoped memory for tpu_custom_call.1']
    #allocation5 [shape = 's32[2]{0}', space=sflag, size = 0x8, scoped, tag = 'scoped memory for tpu_custom_call.1']
    #allocation6 [shape = 'u8[65536]{0}', space=vmem, size = 0x10000, scoped, tag = 'input window, operand 1']
    #allocation7 [shape = 's32[2]{0}', space=sflag, size = 0x8, scoped, tag = 'scoped memory for tpu_custom_call.1']
    #allocation8 [shape = 'u8[16384]{0}', space=vmem, size = 0x4000, scoped, tag = 'output window, operand 0']
    %7 = vsyncpa [#allocation4], 0
    %8 = vsyncpa [#allocation7], 0
    %s9 = scalar_lea.sflag [#allocation7], 1
    %10 = vsyncpa %s9, 0
    %11 = vsyncpa [#allocation5], 0
    %s12 = scalar_lea.sflag [#allocation5], 1
    %13 = vsyncpa %s12, 0
    loop: start=0, step=1, limit=5
    $region2: #{tpu_custom_call.1} parent=1 // loop_pre_header
      _
    $region3: #{tpu_custom_call.1} parent=1 // loop_header
      %s15 = sphi 0, %s19
      %p16 = scmp.ge.s32.totalorder %s15, 5
      %s22 = sphi 0, %s41
      %s23 = sphi 0, %s37
      %s24 = sphi 0, %s33
      %s25 = sphi 0, %s22
      %s26 = sphi 0, %s23
      %s27 = sphi 0, %s24
      %s28 = sphi 0, %s25
      %s29 = sphi 0, %s26
      %s30 = sphi 0, %s27
      %s46 = sphi 0, %s48
      %s49 = sphi 0, %s46
      %s50 = sphi 0, %s49
      %s66 = sphi 0, %s50
      %s74 = sphi 0, %s76
      %s77 = sphi 0, %s74
      %s78 = sphi 0, %s77
      %s94 = sphi 0, %s78
      %s102 = sphi 0, %s104
      %s105 = sphi 0, %s102
      %s106 = sphi 0, %s105
      %s122 = sphi 0, %s106
    $region4: #{tpu_custom_call.1} parent=1 // loop_header_branch
      %18 = sbr.rel (%p16) target = $region8
    $region5: #{tpu_custom_call.1} parent=1 // loop_body
      %s20 = ssub.s32 %s15, 1
      %s21 = ssub.s32 %s15, 2
      %s31 = sadd.s32 1, %s24
      %p32 = scmp.ge.s32.totalorder %s31, 1
      %s33 = scalar_select %p32, 0, %s31
      %s34 = sadd.s32 1, %s23
      %s35 = scalar_select %p32, %s34, %s23
      %p36 = scmp.ge.s32.totalorder %s35, 3
      %s37 = scalar_select %p36, 0, %s35
      %s38 = sadd.s32 1, %s22
      %s39 = scalar_select %p36, %s38, %s22
      %p40 = scmp.ge.s32.totalorder %s39, 1
      %s41 = scalar_select %p40, 0, %s39
      %s42 = ssub.s32 %s22, %s41
      %s43 = ssub.s32 %s24, %s33
      %s44 = sor.u32 %s42, %s43
      %p45 = scmp.eq.s32.totalorder %s44, 0
      %s47 = sadd.s32 %s46, 1
      %s48 = scalar_select %p45, %s46, %s47
      %p51 = pneg %p45
      %p52 = scmp.eq.s32.totalorder %s15, 2
      %p53 = por %p51, %p52
      %p54 = scmp.ne.s32.totalorder %s46, %s49
      %p55 = scmp.eq.s32.totalorder %s15, 0
      %p56 = por %p54, %p55
      %p57 = scmp.ne.s32.totalorder %s46, %s49
      %p58 = scmp.eq.s32.totalorder %s20, 2
      %p59 = por %p57, %p58
      %p60 = scmp.ne.s32.totalorder %s49, %s50
      %p61 = scmp.eq.s32.totalorder %s20, 0
      %p62 = por %p60, %p61
      %p63 = scmp.ne.s32.totalorder %s49, %s50
      %p64 = scmp.eq.s32.totalorder %s21, 2
      %p65 = por %p63, %p64
      %p67 = scmp.ne.s32.totalorder %s50, %s66
      %p68 = scmp.eq.s32.totalorder %s21, 0
      %p69 = por %p67, %p68
      %s70 = ssub.s32 %s24, %s33
      %s71 = ssub.s32 %s23, %s37
      %s72 = sor.u32 %s70, %s71
      %p73 = scmp.eq.s32.totalorder %s72, 0
      %s75 = sadd.s32 %s74, 1
      %s76 = scalar_select %p73, %s74, %s75
      %p79 = pneg %p73
      %p80 = scmp.eq.s32.totalorder %s15, 2
      %p81 = por %p79, %p80
      %p82 = scmp.ne.s32.totalorder %s74, %s77
      %p83 = scmp.eq.s32.totalorder %s15, 0
      %p84 = por %p82, %p83
      %p85 = scmp.ne.s32.totalorder %s74, %s77
      %p86 = scmp.eq.s32.totalorder %s20, 2
      %p87 = por %p85, %p86
      %p88 = scmp.ne.s32.totalorder %s77, %s78
      %p89 = scmp.eq.s32.totalorder %s20, 0
      %p90 = por %p88, %p89
      %p91 = scmp.ne.s32.totalorder %s77, %s78
      %p92 = scmp.eq.s32.totalorder %s21, 2
      %p93 = por %p91, %p92
      %p95 = scmp.ne.s32.totalorder %s78, %s94
      %p96 = scmp.eq.s32.totalorder %s21, 0
      %p97 = por %p95, %p96
      %s98 = ssub.s32 %s22, %s41
      %s99 = ssub.s32 %s23, %s37
      %s100 = sor.u32 %s98, %s99
      %p101 = scmp.eq.s32.totalorder %s100, 0
      %s103 = sadd.s32 %s102, 1
      %s104 = scalar_select %p101, %s102, %s103
      %p107 = pneg %p101
      %p108 = scmp.eq.s32.totalorder %s15, 2
      %p109 = por %p107, %p108
      %p110 = scmp.ne.s32.totalorder %s102, %s105
      %p111 = scmp.eq.s32.totalorder %s15, 0
      %p112 = por %p110, %p111
      %p113 = scmp.ne.s32.totalorder %s102, %s105
      %p114 = scmp.eq.s32.totalorder %s20, 2
      %p115 = por %p113, %p114
      %p116 = scmp.ne.s32.totalorder %s105, %s106
      %p117 = scmp.eq.s32.totalorder %s20, 0
      %p118 = por %p116, %p117
      %p119 = scmp.ne.s32.totalorder %s105, %s106
      %p120 = scmp.eq.s32.totalorder %s21, 2
      %p121 = por %p119, %p120
      %p123 = scmp.ne.s32.totalorder %s106, %s122
      %p124 = scmp.eq.s32.totalorder %s21, 0
      %p125 = por %p123, %p124
      %p126 = scmp.le.s32.totalorder 1, %s15
      %p127 = scmp.lt.s32.totalorder %s15, 4
      %p128 = pnand %p126, %p127
      %p129 = pneg %p128
      // Predicated region
      $region9: #{tpu_custom_call.1} parent=5 // pred_check
        _
      $region10: #{tpu_custom_call.1} parent=5 // pred_check_branch
        %131 = sbr.rel (%p128) target = $region12
      $region11: #{tpu_custom_call.1} parent=5 // pred_region
        %s132 = ssub.s32 %s15, 1
        // Predicated region
        $region13: #{tpu_custom_call.1} parent=11 // pred_check
          %p133 = pneg %p62
        $region14: #{tpu_custom_call.1} parent=11 // pred_check_branch
          %135 = sbr.rel (%p133) target = $region16
        $region15: #{tpu_custom_call.1} parent=11 // pred_region
          %s136 = smul.u32 4, %s25
          %s138 = ssub.s32 256, 256
          %139 = vsyncadd [#allocation4], %s138
          %s140 = sadd.s32 %s27, %s136
          %s141 = smul.addr %s140, 64
          %s142 = scalar_lea.hbm %s0, %s141
          %s143 = sshll.u32 [#allocation3], 4
          %s144 = int_to_ptr.vmem [resolvable:$true] %s143
          %149 = dma.hbm_to_vmem [thread:$0]  %s142, 256, %s144, [#allocation4], 64, 64, 4
        $region16: #{tpu_custom_call.1} parent=11 // pred_fallthru
          _
      $region12: #{tpu_custom_call.1} parent=5 // pred_fallthru
        _
      %p150 = scmp.lt.s32.totalorder %s15, 3
      // Predicated region
      $region17: #{tpu_custom_call.1} parent=5 // pred_check
        %p151 = pneg %p150
      $region18: #{tpu_custom_call.1} parent=5 // pred_check_branch
        %153 = sbr.rel (%p151) target = $region20
      $region19: #{tpu_custom_call.1} parent=5 // pred_region
        // Predicated region
        $region21: #{tpu_custom_call.1} parent=19 // pred_check
          %p154 = pneg %p84
        $region22: #{tpu_custom_call.1} parent=19 // pred_check_branch
          %156 = sbr.rel (%p154) target = $region24
        $region23: #{tpu_custom_call.1} parent=19 // pred_region
          %s157 = sand.u32 %s74, 1
          %s158 = scalar_lea.sflag [#allocation7], %s157
          %s159 = sand.u32 %s74, 1
          %s160 = smul.addr %s159, 64
          %s161 = scalar_lea.vmem [#allocation6], %s160
          %s162 = smul.u32 16, %s24
          %s164 = ssub.s32 1024, 1024
          %165 = vsyncadd %s158, %s164
          %s166 = smul.addr %s162, 3
          %s167 = sadd.s32 %s23, %s166
          %s168 = smul.addr %s167, 64
          %s169 = scalar_lea.hbm %s1, %s168
          %s170 = sshll.u32 %s161, 4
          %s171 = int_to_ptr.vmem [resolvable:$true] %s170
          %176 = dma.hbm_to_vmem [thread:$0]  %s169, 1024, %s171, %s158, 192, 64, 4
        $region24: #{tpu_custom_call.1} parent=19 // pred_fallthru
          _
      $region20: #{tpu_custom_call.1} parent=5 // pred_fallthru
        _
      %p177 = scmp.le.s32.totalorder 1, %s15
      %p178 = scmp.lt.s32.totalorder %s15, 4
      %p179 = pnand %p177, %p178
      %p180 = pneg %p179
      // Predicated region
      $region25: #{tpu_custom_call.1} parent=5 // pred_check
        _
      $region26: #{tpu_custom_call.1} parent=5 // pred_check_branch
        %182 = sbr.rel (%p179) target = $region28
      $region27: #{tpu_custom_call.1} parent=5 // pred_region
        %s183 = ssub.s32 %s15, 1
        // Predicated region
        $region29: #{tpu_custom_call.1} parent=27 // pred_check
          %p184 = pneg %p62
        $region30: #{tpu_custom_call.1} parent=27 // pred_check_branch
          %186 = sbr.rel (%p184) target = $region32
        $region31: #{tpu_custom_call.1} parent=27 // pred_region
          %187 = dma.done [#allocation4], 256
        $region32: #{tpu_custom_call.1} parent=27 // pred_fallthru
          _
        %s188 = sand.u32 %s77, 1
        %s189 = scalar_lea.sflag [#allocation7], %s188
        %s190 = sand.u32 %s77, 1
        %s191 = smul.addr %s190, 64
        %s192 = scalar_lea.vmem [#allocation6], %s191
        // Predicated region
        $region33: #{tpu_custom_call.1} parent=27 // pred_check
          %p193 = pneg %p90
        $region34: #{tpu_custom_call.1} parent=27 // pred_check_branch
          %195 = sbr.rel (%p193) target = $region36
        $region35: #{tpu_custom_call.1} parent=27 // pred_region
          %196 = dma.done %s189, 1024
        $region36: #{tpu_custom_call.1} parent=27 // pred_fallthru
          _
        %p197 = pneg %p62
        %p198 = pneg %p59
        %s199 = sand.u32 %s77, 1
        %s200 = scalar_lea.sflag [#allocation7], %s199
        %s201 = sand.u32 %s77, 1
        %s202 = smul.addr %s201, 64
        %s203 = scalar_lea.vmem [#allocation6], %s202
        %p204 = pneg %p90
        %p205 = pneg %p87
        %p206 = pneg %p118
        %p207 = pneg %p115
        %s208 = sand.u32 %s105, 1
        %s209 = scalar_lea.sflag [#allocation5], %s208
        %s210 = sand.u32 %s105, 1
        %s211 = smul.addr %s210, 16
        %s212 = scalar_lea.vmem [#allocation8], %s211
        %s213 = smul.u32 4, %s25
        %s214 = smul.u32 16, %s27
        %s215 = smul.u32 4, %s25
        %p217 = scmp.eq.s32.totalorder %s27, 0
        // Predicated region
        $region37: #{tpu_custom_call.1} parent=27 // pred_check
          %p218 = pneg %p217
        $region38: #{tpu_custom_call.1} parent=27 // pred_check_branch
          %220 = sbr.rel (%p218) target = $region40
        $region39: #{tpu_custom_call.1} parent=27 // pred_region
          %221 = vst [vmem:[#allocation2] sm:$0xff] 0.0
          %222 = vst [vmem:[#allocation2 + $0x8] sm:$0xff] 0.0
          %223 = vst [vmem:[#allocation2 + $0x10] sm:$0xff] 0.0
          %224 = vst [vmem:[#allocation2 + $0x18] sm:$0xff] 0.0
        $region40: #{tpu_custom_call.1} parent=27 // pred_fallthru
          _
        %v225 = vld [vmem:[#allocation2] sm:$0xff]
        %v226 = vld [vmem:[#allocation2 + $0x8] sm:$0xff]
        %v227 = vld [vmem:[#allocation2 + $0x10] sm:$0xff]
        %v228 = vld [vmem:[#allocation2 + $0x18] sm:$0xff]
        %v229 = vld [vmem:[#allocation3] sm:$0xf]
        %v230 = vld [vmem:[#allocation3 + $0x4] sm:$0xf]
        %v231 = vld [vmem:[#allocation3 + $0x8] sm:$0xf]
        %v232 = vld [vmem:[#allocation3 + $0xc] sm:$0xf]
        %v233 = vld [vmem:[%s192] sm:$0xf]
        %v234 = vld [vmem:[%s192 + $0x4] sm:$0xf]
        %v235 = vld [vmem:[%s192 + $0x8] sm:$0xf]
        %v236 = vld [vmem:[%s192 + $0xc] sm:$0xf]
        %v237 = vld [vmem:[%s192 + $0x10] sm:$0xf]
        %v238 = vld [vmem:[%s192 + $0x14] sm:$0xf]
        %v239 = vld [vmem:[%s192 + $0x18] sm:$0xf]
        %v240 = vld [vmem:[%s192 + $0x1c] sm:$0xf]
        %v241 = vld [vmem:[%s192 + $0x20] sm:$0xf]
        %v242 = vld [vmem:[%s192 + $0x24] sm:$0xf]
        %v243 = vld [vmem:[%s192 + $0x28] sm:$0xf]
        %v244 = vld [vmem:[%s192 + $0x2c] sm:$0xf]
        %v245 = vld [vmem:[%s192 + $0x30] sm:$0xf]
        %v246 = vld [vmem:[%s192 + $0x34] sm:$0xf]
        %v247 = vld [vmem:[%s192 + $0x38] sm:$0xf]
        %v248 = vld [vmem:[%s192 + $0x3c] sm:$0xf]
        %v253 = vunpack.c.l.b16 %v229
        %v254 = vunpack.c.l.b16 %v230
        %v255 = vunpack.c.l.b16 %v231
        %v256 = vunpack.c.l.b16 %v232
        %v257 = vpack.c.b16 %v254, %v253
        %v258 = vpack.c.b16 %v256, %v255
        %v277 = vunpack.c.l.b16 %v233
        %v278 = vunpack.c.l.b16 %v234
        %v279 = vunpack.c.l.b16 %v235
        %v280 = vunpack.c.l.b16 %v236
        %v281 = vunpack.c.l.b16 %v237
        %v282 = vunpack.c.l.b16 %v238
        %v283 = vunpack.c.l.b16 %v239
        %v284 = vunpack.c.l.b16 %v240
        %v285 = vunpack.c.l.b16 %v241
        %v286 = vunpack.c.l.b16 %v242
        %v287 = vunpack.c.l.b16 %v243
        %v288 = vunpack.c.l.b16 %v244
        %v289 = vunpack.c.l.b16 %v245
        %v290 = vunpack.c.l.b16 %v246
        %v291 = vunpack.c.l.b16 %v247
        %v292 = vunpack.c.l.b16 %v248
        %v293 = vpack.c.b16 %v278, %v277
        %v294 = vpack.c.b16 %v280, %v279
        %v295 = vpack.c.b16 %v282, %v281
        %v296 = vpack.c.b16 %v284, %v283
        %v297 = vpack.c.b16 %v286, %v285
        %v298 = vpack.c.b16 %v288, %v287
        %v299 = vpack.c.b16 %v290, %v289
        %v300 = vpack.c.b16 %v292, %v291
        %309 = vmatprep.subr.bf16.mxu0 0
        %310 = vmatpush1.bf16.msra.mxu0 %v293
        %311 = vmatprep.subr.bf16.mxu0 0
        %312 = vmatpush1.bf16.msra.mxu0 %v294
        %313 = vmatprep.subr.bf16.mxu0 0
        %314 = vmatpush1.bf16.msra.mxu0 %v295
        %315 = vmatprep.subr.bf16.mxu0 0
        %316 = vmatpush1.bf16.msra.mxu0 %v296
        %317 = vmatprep.subr.bf16.mxu0 0
        %318 = vmatpush1.bf16.msra.mxu0 %v297
        %319 = vmatprep.subr.bf16.mxu0 0
        %320 = vmatpush1.bf16.msra.mxu0 %v298
        %321 = vmatprep.subr.bf16.mxu0 0
        %322 = vmatpush1.bf16.msra.mxu0 %v299
        %323 = vmatprep.subr.bf16.mxu0 0
        %324 = vmatpush1.bf16.msra.mxu0 %v300
        %325 = vmatprep.subr.bf16.mxu0 0
        %326 = vmatpush1.bf16.msra.mxu0 0
        %327 = vmatprep.subr.bf16.mxu0 0
        %328 = vmatpush1.bf16.msra.mxu0 0
        %329 = vmatprep.subr.bf16.mxu0 0
        %330 = vmatpush1.bf16.msra.mxu0 0
        %331 = vmatprep.subr.bf16.mxu0 0
        %332 = vmatpush1.bf16.msra.mxu0 0
        %333 = vmatprep.subr.bf16.mxu0 0
        %334 = vmatpush1.bf16.msra.mxu0 0
        %335 = vmatprep.subr.bf16.mxu0 0
        %336 = vmatpush1.bf16.msra.mxu0 0
        %337 = vmatprep.subr.bf16.mxu0 0
        %338 = vmatpush1.bf16.msra.mxu0 0
        %339 = vmatprep.subr.bf16.mxu0 0
        %340 = vmatpush1.bf16.msra.mxu0 0
        %341 = vmatprep.mubr.bf16.mxu0 0
        %342 = vmatmul.mubr.bf16.gmra.mrb[0].mxu0 %v257
        %v343 = vpop.f32.mrb[0].mxu0
        %v344 = vadd.f32 0.0, %v343
        %v345 = vpop.f32.mrb[0].mxu0
        %v346 = vpop.f32.mrb[0].mxu0
        %v347 = vadd.f32 0.0, %v346
        %v348 = vpop.f32.mrb[0].mxu0
        %349 = vmatprep.mubr.bf16.mxu0 0
        %350 = vmatmul.mubr.bf16.gmra.mrb[0].mxu0 %v258
        %v351 = vpop.f32.mrb[0].mxu0
        %v352 = vadd.f32 0.0, %v351
        %v353 = vpop.f32.mrb[0].mxu0
        %v354 = vpop.f32.mrb[0].mxu0
        %v355 = vadd.f32 0.0, %v354
        %v356 = vpop.f32.mrb[0].mxu0
        %357 = vdwg.mxu0
        %v358 = vadd.f32 %v225, %v344
        %v359 = vadd.f32 %v226, %v347
        %v360 = vadd.f32 %v227, %v352
        %v361 = vadd.f32 %v228, %v355
        %362 = vst [vmem:[#allocation2] sm:$0xff] %v358
        %363 = vst [vmem:[#allocation2 + $0x8] sm:$0xff] %v359
        %364 = vst [vmem:[#allocation2 + $0x10] sm:$0xff] %v360
        %365 = vst [vmem:[#allocation2 + $0x18] sm:$0xff] %v361
        // Predicated region
        $region41: #{tpu_custom_call.1} parent=27 // pred_check
          %p366 = pneg %p217
        $region42: #{tpu_custom_call.1} parent=27 // pred_check_branch
          %368 = sbr.rel (%p366) target = $region44
        $region43: #{tpu_custom_call.1} parent=27 // pred_region
          %v369 = vld [vmem:[#allocation2] sm:$0xff]
          %v370 = vld [vmem:[#allocation2 + $0x8] sm:$0xff]
          %v371 = vld [vmem:[#allocation2 + $0x10] sm:$0xff]
          %v372 = vld [vmem:[#allocation2 + $0x18] sm:$0xff]
          %v373 = vpack.c.bf16 %v370, %v369
          %v374 = vpack.c.bf16 %v372, %v371
          %v377 = vunpack.c.l.b16 %v373
          %v378 = vunpack.c.h.b16 %v373
          %v379 = vunpack.c.l.b16 %v374
          %v380 = vunpack.c.h.b16 %v374
          %v381 = vpack.c.b16 %v377, %v377
          %v382 = vpack.c.b16 %v378, %v378
          %v383 = vpack.c.b16 %v379, %v379
          %v384 = vpack.c.b16 %v380, %v380
          %389 = vst [vmem:[%s212] sm:$0xf] %v381
          %390 = vst [vmem:[%s212 + $0x4] sm:$0xf] %v382
          %391 = vst [vmem:[%s212 + $0x8] sm:$0xf] %v383
          %392 = vst [vmem:[%s212 + $0xc] sm:$0xf] %v384
        $region44: #{tpu_custom_call.1} parent=27 // pred_fallthru
          _
        %s393 = sand.u32 %s105, 1
        %s394 = scalar_lea.sflag [#allocation5], %s393
        %s395 = sand.u32 %s105, 1
        %s396 = smul.addr %s395, 16
        %s397 = scalar_lea.vmem [#allocation8], %s396
        // Predicated region
        $region45: #{tpu_custom_call.1} parent=27 // pred_check
          %p398 = pneg %p115
        $region46: #{tpu_custom_call.1} parent=27 // pred_check_branch
          %400 = sbr.rel (%p398) target = $region48
        $region47: #{tpu_custom_call.1} parent=27 // pred_region
          %s401 = smul.u32 4, %s25
          %s403 = ssub.s32 256, 256
          %404 = vsyncadd %s394, %s403
          %s405 = smul.addr %s401, 3
          %s406 = sadd.s32 %s26, %s405
          %s407 = smul.addr %s406, 64
          %s408 = scalar_lea.hbm %s2, %s407
          %s409 = sshll.u32 %s397, 4
          %s410 = int_to_ptr.vmem [resolvable:$true] %s409
          %415 = dma.vmem_to_hbm [thread:$0]  %s410, 256, %s408, %s394, 64, 192, 4
        $region48: #{tpu_custom_call.1} parent=27 // pred_fallthru
          _
      $region28: #{tpu_custom_call.1} parent=5 // pred_fallthru
        _
      %p416 = scmp.le.s32.totalorder 2, %s15
      // Predicated region
      $region49: #{tpu_custom_call.1} parent=5 // pred_check
        %p417 = pneg %p416
      $region50: #{tpu_custom_call.1} parent=5 // pred_check_branch
        %419 = sbr.rel (%p417) target = $region52
      $region51: #{tpu_custom_call.1} parent=5 // pred_region
        %s420 = ssub.s32 %s15, 2
        // Predicated region
        $region53: #{tpu_custom_call.1} parent=51 // pred_check
          %p421 = pneg %p121
        $region54: #{tpu_custom_call.1} parent=51 // pred_check_branch
          %423 = sbr.rel (%p421) target = $region56
        $region55: #{tpu_custom_call.1} parent=51 // pred_region
          %s424 = sand.u32 %s106, 1
          %s425 = scalar_lea.sflag [#allocation5], %s424
          %s426 = sand.u32 %s106, 1
          %s427 = smul.addr %s426, 16
          %s428 = scalar_lea.vmem [#allocation8], %s427
          %429 = dma.done %s425, 256
        $region56: #{tpu_custom_call.1} parent=51 // pred_fallthru
          _
      $region52: #{tpu_custom_call.1} parent=5 // pred_fallthru
        _
    $region6: #{tpu_custom_call.1} parent=1 // loop_footer
      %s19 = sadd.s32 1, %s15
    $region7: #{tpu_custom_call.1} parent=1 // loop_footer_branch
      %14 = sbr.rel target = $region3
    $region8: #{tpu_custom_call.1} parent=1 // loop_exit
      _
    %430 = vsyncpa [#allocation4], 1
    %s431 = scalar_lea.sflag [#allocation4], 1
    %432 = vsyncpa %s431, 1
    %433 = vsyncpa [#allocation7], 1
    %s434 = scalar_lea.sflag [#allocation7], 1
    %435 = vsyncpa %s434, 1
    %436 = vsyncpa [#allocation5], 1
    %s437 = scalar_lea.sflag [#allocation5], 1
    %438 = vsyncpa %s437, 1

</llo_original>
